<compile_context>
chip_gen: v5e
topology: v5e:2x2
jax: 0.10.0
libtpu: 0.0.40
codegen_flags: <defaults>
</compile_context>

<pallas_src>
import functools

import jax
import jax.numpy as jnp
from jax import lax
from jax.experimental import pallas as pl
from jax.experimental.pallas import tpu as pltpu


_MAX_SPLITS = 2                       # maps to the 2 TensorCores on v7x
_TARGET_TILE_VMEM_BYTES = 2 * 1024 * 1024   # per-buffer padded tile budget
_MAX_TILE_N = 32768


def _round_up(x, m):
    return ((x + m - 1) // m) * m


def _nll_partial_sum_kernel(pred_ref, tgt_ref, partial_ref, *,
                            n_total, tile_n, tiles_per_split):
    s = pl.program_id(0)   # parallel split (TC shard on v7x)
    i = pl.program_id(1)   # reduction step within the split

    @pl.when(i == 0)
    def _():
        partial_ref[...] = jnp.zeros_like(partial_ref)

    # Global row offset of this (possibly clamped / partial) tile.
    row_start = (s * tiles_per_split + i) * tile_n

    @pl.when(row_start < n_total)
    def _():
        pred = pred_ref[...]              # (tile_n, C), native dtype
        tgt = tgt_ref[...]                # (tile_n, 1), int32
        tn, c = pred.shape

        class_ids = lax.broadcasted_iota(jnp.int32, (tn, c), 1)
        row_ids = lax.broadcasted_iota(jnp.int32, (tn, c), 0)
        # Rows at or past n_total contribute nothing to the sum.
        valid = (class_ids == tgt) & ((row_ids + row_start) < n_total)

        # Select (not multiply-by-one-hot): -inf log-probs in non-target
        # columns cannot produce 0 * -inf = NaN.  Accumulate in f32.
        picked = jnp.where(valid, pred.astype(jnp.float32), jnp.float32(0.0))
        partial_ref[...] = partial_ref[...] + jnp.sum(picked)


def nll_loss_pallas(pred, target):
    """pred: (N, C) log-probs (any float dtype), target: (N,) ints -> scalar f32."""
    n, c = pred.shape
    tgt2d = target.astype(jnp.int32).reshape(n, 1)
    itemsize = jnp.dtype(pred.dtype).itemsize

    # Tile height sized by *padded* VMEM bytes per row (lane dim pads to 128),
    # so even tiny class counts get tiles big enough to hide per-step overhead.
    padded_row_bytes = max(1, _round_up(c, 128) * itemsize)
    tile_n = _TARGET_TILE_VMEM_BYTES // padded_row_bytes
    tile_n = max(8, min(tile_n, _MAX_TILE_N))
    if tile_n >= n:
        tile_n = n                        # single tile; full-dim block is legal
    else:
        tile_n = max(8, (tile_n // 8) * 8)

    num_tiles = pl.cdiv(n, tile_n)
    num_splits = _MAX_SPLITS if num_tiles >= _MAX_SPLITS else 1
    tiles_per_split = pl.cdiv(num_tiles, num_splits)
    last_tile = num_tiles - 1

    def in_map(s, i):
        # Clamp so the DMA window always stays inside the logical tiling;
        # over-read tiles are skipped / masked in the kernel.
        return (jnp.minimum(s * tiles_per_split + i, last_tile), 0)

    kernel = functools.partial(
        _nll_partial_sum_kernel,
        n_total=n, tile_n=tile_n, tiles_per_split=tiles_per_split)

    cost = pl.CostEstimate(
        flops=2 * n * c,
        transcendentals=0,
        bytes_accessed=n * c * itemsize + n * 4 + num_splits * 4)

    partials = pl.pallas_call(
        kernel,
        out_shape=jax.ShapeDtypeStruct((num_splits, 1, 1), jnp.float32),
        grid_spec=pltpu.PrefetchScalarGridSpec(
            num_scalar_prefetch=0,
            grid=(num_splits, tiles_per_split),
            in_specs=[
                pl.BlockSpec((tile_n, c), in_map),
                pl.BlockSpec((tile_n, 1), in_map),
            ],
            out_specs=pl.BlockSpec((1, 1, 1), lambda s, i: (s, 0, 0)),
        ),
        compiler_params=pltpu.CompilerParams(
            dimension_semantics=("parallel", "arbitrary"),
            vmem_limit_bytes=32 * 1024 * 1024),
        cost_estimate=cost,
    )(pred, tgt2d)

    # Single finalize step: combine per-split partial sums, negate, divide by N.
    return -(jnp.sum(partials) / jnp.float32(n))


def get_loss_forward(pred, target, trans_feat=None, weight=None,
                     mat_diff_loss_scale=0.001):
    # trans_feat / weight / mat_diff_loss_scale are unused in the reference
    # forward pass (it returns only the NLL term).
    del trans_feat, weight, mat_diff_loss_scale
    return nll_loss_pallas(pred, target)


if __name__ == "__main__":
    key = jax.random.PRNGKey(0)
    k1, k2, k3 = jax.random.split(key, 3)

    N, C = 32, 40   # small batch of 32 samples, 40 classes (ModelNet40-style)
    logits = jax.random.normal(k1, (N, C), dtype=jnp.float32)
    pred = jax.nn.log_softmax(logits, axis=-1)               # log-probabilities
    target = jax.random.randint(k2, (N,), 0, C, dtype=jnp.int32)
    trans_feat = jax.random.normal(k3, (N, 3, 3), dtype=jnp.float32)  # unused
    weight = None

    loss = get_loss_forward(pred, target, trans_feat, weight)
    loss = jax.block_until_ready(loss)

    # Reference check in plain JAX (same semantics as F.nll_loss, mean reduction).
    ref = -jnp.mean(pred[jnp.arange(N), target])
    assert jnp.allclose(loss, ref, atol=1e-6, rtol=1e-6), (loss, ref)

    print("KERNEL_OK")
</pallas_src>

<mosaic_0001>
module attributes {stable_mosaic.version = 11 : i64} {
  func.func @_nll_partial_sum_kernel(%arg0: i32, %arg1: i32, %arg2: memref<32x40xf32, #tpu.memory_space<vmem>>, %arg3: memref<32x1xi32, #tpu.memory_space<vmem>>, %arg4: memref<1x1x1xf32, #tpu.memory_space<vmem>>) attributes {dimension_semantics = [#tpu.dimension_semantics<parallel>, #tpu.dimension_semantics<arbitrary>], iteration_bounds = array<i64: 1, 1>, scalar_prefetch = 0 : i64, scratch_operands = 0 : i64, tpu.core_type = #tpu.core_type<tc>, window_params = [{transform_indices = @transform_0, window_bounds = array<i64: 32, 40>}, {transform_indices = @transform_1, window_bounds = array<i64: 32, 1>}, {transform_indices = @transform_2, window_bounds = array<i64: 1, 1, 1>}]} {
    %c0_i32 = arith.constant 0 : i32
    %0 = arith.cmpi eq, %arg1, %c0_i32 : i32
    %1 = arith.extui %0 : i1 to i32
    %c0_i32_0 = arith.constant 0 : i32
    %2 = arith.cmpi ne, %1, %c0_i32_0 : i32
    scf.if %2 {
      %cst = arith.constant 0.000000e+00 : f32
      %9 = vector.broadcast %cst : f32 to vector<1x1x1xf32>
      %c0 = arith.constant 0 : index
      %c0_3 = arith.constant 0 : index
      %c0_4 = arith.constant 0 : index
      %10 = vector.load %arg4[%c0, %c0_3, %c0_4] : memref<1x1x1xf32, #tpu.memory_space<vmem>>, vector<1x1x1xf32>
      tpu.vector_store %arg4[%c0, %c0_3, %c0_4], %9 {strides = array<i32>} : memref<1x1x1xf32, #tpu.memory_space<vmem>>, vector<1x1x1xf32>,
    } else {
    }
    %c1_i32 = arith.constant 1 : i32
    %3 = arith.muli %arg0, %c1_i32 : i32
    %4 = arith.addi %3, %arg1 : i32
    %c32_i32 = arith.constant 32 : i32
    %5 = arith.muli %4, %c32_i32 : i32
    %c32_i32_1 = arith.constant 32 : i32
    %6 = arith.cmpi slt, %5, %c32_i32_1 : i32
    %7 = arith.extui %6 : i1 to i32
    %c0_i32_2 = arith.constant 0 : i32
    %8 = arith.cmpi ne, %7, %c0_i32_2 : i32
    scf.if %8 {
      %c0 = arith.constant 0 : index
      %c0_3 = arith.constant 0 : index
      %9 = vector.load %arg2[%c0, %c0_3] : memref<32x40xf32, #tpu.memory_space<vmem>>, vector<32x40xf32>
      %c0_4 = arith.constant 0 : index
      %c0_5 = arith.constant 0 : index
      %10 = vector.load %arg3[%c0_4, %c0_5] : memref<32x1xi32, #tpu.memory_space<vmem>>, vector<32x1xi32>
      %11 = tpu.iota {dimensions = array<i32: 1>} : vector<32x40xi32>
      %12 = tpu.iota {dimensions = array<i32: 0>} : vector<32x40xi32>
      %13 = vector.broadcast %10 : vector<32x1xi32> to vector<32x40xi32>
      %14 = arith.cmpi eq, %11, %13 : vector<32x40xi32>
      %15 = vector.broadcast %5 : i32 to vector<32x40xi32>
      %16 = arith.addi %12, %15 : vector<32x40xi32>
      %c32_i32_6 = arith.constant 32 : i32
      %17 = vector.broadcast %c32_i32_6 : i32 to vector<32x40xi32>
      %18 = arith.cmpi slt, %16, %17 : vector<32x40xi32>
      %19 = arith.andi %14, %18 : vector<32x40xi1>
      %cst = arith.constant 0.000000e+00 : f32
      %20 = vector.broadcast %cst : f32 to vector<32x40xf32>
      %21 = arith.select %19, %9, %20 : vector<32x40xi1>, vector<32x40xf32>
      %c0_7 = arith.constant 0 : index
      %c0_8 = arith.constant 0 : index
      %c0_9 = arith.constant 0 : index
      %22 = vector.load %arg4[%c0_7, %c0_8, %c0_9] : memref<1x1x1xf32, #tpu.memory_space<vmem>>, vector<1x1x1xf32>
      %23 = vector.shape_cast %21 : vector<32x40xf32> to vector<1x32x40xf32>
      %cst_10 = arith.constant dense<0.000000e+00> : vector<1xf32>
      %24 = vector.multi_reduction <add>, %23, %cst_10 [1, 2] : vector<1x32x40xf32> to vector<1xf32>
      %25 = vector.shape_cast %24 : vector<1xf32> to vector<1x1x1xf32>
      %26 = vector.extract %25[0, 0, 0] : f32 from vector<1x1x1xf32>
      %27 = vector.broadcast %26 : f32 to vector<1x1x1xf32>
      %28 = arith.addf %22, %27 : vector<1x1x1xf32>
      %c0_11 = arith.constant 0 : index
      %c0_12 = arith.constant 0 : index
      %c0_13 = arith.constant 0 : index
      %29 = vector.load %arg4[%c0_11, %c0_12, %c0_13] : memref<1x1x1xf32, #tpu.memory_space<vmem>>, vector<1x1x1xf32>
      tpu.vector_store %arg4[%c0_11, %c0_12, %c0_13], %28 {strides = array<i32>} : memref<1x1x1xf32, #tpu.memory_space<vmem>>, vector<1x1x1xf32>,
    } else {
    }
    return
  }
  func.func @transform_0(%arg0: i32, %arg1: i32) -> (i32, i32) {
    %c1_i32 = arith.constant 1 : i32
    %0 = arith.muli %arg0, %c1_i32 : i32
    %1 = arith.addi %0, %arg1 : i32
    %c0_i32 = arith.constant 0 : i32
    %2 = arith.minsi %1, %c0_i32 : i32
    %c0_i32_0 = arith.constant 0 : i32
    %c0_i32_1 = arith.constant 0 : i32
    return %2, %c0_i32_0 : i32, i32
  }
  func.func @transform_1(%arg0: i32, %arg1: i32) -> (i32, i32) {
    %c1_i32 = arith.constant 1 : i32
    %0 = arith.muli %arg0, %c1_i32 : i32
    %1 = arith.addi %0, %arg1 : i32
    %c0_i32 = arith.constant 0 : i32
    %2 = arith.minsi %1, %c0_i32 : i32
    %c0_i32_0 = arith.constant 0 : i32
    %c0_i32_1 = arith.constant 0 : i32
    return %2, %c0_i32_0 : i32, i32
  }
  func.func @transform_2(%arg0: i32, %arg1: i32) -> (i32, i32, i32) {
    %c0_i32 = arith.constant 0 : i32
    %c0_i32_0 = arith.constant 0 : i32
    %c0_i32_1 = arith.constant 0 : i32
    return %arg0, %c0_i32, %c0_i32_0 : i32, i32, i32
  }
}

</mosaic_0001>

<llo_original>
// kernel: tpu_custom_call.1
$region0: #{tpu_custom_call.1}
  #allocation0 [shape = 'u32[]', space=smem, size = 0x4, offset = 0x4, fixed_abs, tag = 'smem constant byte address 0x4 - core index']
  #allocation1 [shape = 'u32[72,128]{1,0:T(1,128)}', space=vmem, size = 0x9000, scoped, tag = 'internal scratch']
  %s0 = inlined_call_operand.vmem [shape: f32[32,40], index: 0, kind: input, shape index: {}]
  %s1 = inlined_call_operand.vmem [shape: s32[32,1], index: 1, kind: input, shape index: {}]
  %s2 = inlined_call_operand.hbm [shape: f32[1,1,1], index: 2, kind: output, shape index: {}]
  %s3 = sld [smem:[#allocation0]]
  $region26: #{tpu_custom_call.1} parent=0
    _
  %s5 = ssub.s32 1, %s3
  %s6 = scalar_select 0, %s5, %s3
  $region1: #{tpu_custom_call.1} parent=0
    #allocation2 [shape = 'u8[512]{0}', space=vmem, size = 0x400, scoped, tag = 'output window, operand 0, single buffered']
    #allocation3 [shape = 's32[1]{0}', space=sflag, size = 0x4, scoped, tag = 'scoped memory for tpu_custom_call.1']
    %7 = vsyncpa [#allocation3], 0
    // Predicated region
    $region2: #{tpu_custom_call.1} parent=1 // pred_check
      _
    $region3: #{tpu_custom_call.1} parent=1 // pred_check_branch
      %9 = sbr.rel (0) target = $region5
    $region4: #{tpu_custom_call.1} parent=1 // pred_region
      %s10 = sadd.s32 0, 0
      %p11 = scmp.lt.s32.totalorder %s10, 0
      %s12 = scalar_select %p11, %s10, 0
      %s13 = smul.u32 4, %s12
      %p14 = scmp.lt.s32.totalorder %s13, 3
      %s15 = scalar_select %p14, %s13, 3
      %s16 = smul.addr %s15, 8
      %s17 = scalar_lea.vmem %s0, %s16
      %s18 = sadd.s32 0, 0
      %p19 = scmp.lt.s32.totalorder %s18, 0
      %s20 = scalar_select %p19, %s18, 0
      %s21 = smul.u32 4, %s20
    $region5: #{tpu_custom_call.1} parent=1 // pred_fallthru
      _
    // Predicated region
    $region6: #{tpu_custom_call.1} parent=1 // pred_check
      _
    $region7: #{tpu_custom_call.1} parent=1 // pred_check_branch
      %23 = sbr.rel (0) target = $region9
    $region8: #{tpu_custom_call.1} parent=1 // pred_region
      %s24 = sadd.s32 0, 0
      %p25 = scmp.lt.s32.totalorder %s24, 0
      %s26 = scalar_select %p25, %s24, 0
      %s27 = smul.u32 4, %s26
      %p28 = scmp.lt.s32.totalorder %s27, 3
      %s29 = scalar_select %p28, %s27, 3
      %s30 = smul.addr %s29, 8
      %s31 = scalar_lea.vmem %s1, %s30
      %s32 = sadd.s32 0, 0
      %p33 = scmp.lt.s32.totalorder %s32, 0
      %s34 = scalar_select %p33, %s32, 0
      %s35 = smul.u32 4, %s34
    $region9: #{tpu_custom_call.1} parent=1 // pred_fallthru
      _
    %s36 = sadd.s32 0, 0
    %p37 = scmp.lt.s32.totalorder %s36, 0
    %s38 = scalar_select %p37, %s36, 0
    %s39 = smul.u32 4, %s38
    %p40 = scmp.lt.s32.totalorder %s39, 3
    %s41 = scalar_select %p40, %s39, 3
    %s42 = smul.addr %s41, 8
    %s43 = scalar_lea.vmem %s0, %s42
    %s44 = sadd.s32 0, 0
    %p45 = scmp.lt.s32.totalorder %s44, 0
    %s46 = scalar_select %p45, %s44, 0
    %s47 = smul.u32 4, %s46
    %p48 = scmp.lt.s32.totalorder %s47, 3
    %s49 = scalar_select %p48, %s47, 3
    %s50 = smul.addr %s49, 8
    %s51 = scalar_lea.vmem %s1, %s50
    %s52 = sadd.s32 0, 0
    %p53 = scmp.lt.s32.totalorder %s52, 0
    %s54 = scalar_select %p53, %s52, 0
    %s55 = smul.u32 4, %s54
    %p56 = scmp.lt.s32.totalorder %s55, 3
    %s57 = scalar_select %p56, %s55, 3
    %s58 = smul.addr %s57, 8
    %s59 = scalar_lea.vmem %s0, %s58
    %s60 = sadd.s32 0, 0
    %p61 = scmp.lt.s32.totalorder %s60, 0
    %s62 = scalar_select %p61, %s60, 0
    %s63 = smul.u32 4, %s62
    %s64 = sadd.s32 0, 0
    %p65 = scmp.lt.s32.totalorder %s64, 0
    %s66 = scalar_select %p65, %s64, 0
    %s67 = smul.u32 4, %s66
    %p68 = scmp.lt.s32.totalorder %s67, 3
    %s69 = scalar_select %p68, %s67, 3
    %s70 = smul.addr %s69, 8
    %s71 = scalar_lea.vmem %s1, %s70
    %s72 = sadd.s32 0, 0
    %p73 = scmp.lt.s32.totalorder %s72, 0
    %s74 = scalar_select %p73, %s72, 0
    %s75 = smul.u32 4, %s74
    %p76 = scmp.eq.s32.totalorder 0, 0
    // Predicated region
    $region10: #{tpu_custom_call.1} parent=1 // pred_check
      %p77 = pneg %p76
    $region11: #{tpu_custom_call.1} parent=1 // pred_check_branch
      %79 = sbr.rel (%p77) target = $region13
    $region12: #{tpu_custom_call.1} parent=1 // pred_region
      %vm80 = vcmask 0
      %81 = vst.msk [vmem:[#allocation2] sm:$0x1] %vm80, 0.0
    $region13: #{tpu_custom_call.1} parent=1 // pred_fallthru
      _
    %s82 = sadd.s32 0, 0
    %s83 = smul.u32 %s82, 32
    %p84 = scmp.lt.s32.totalorder %s83, 32
    // Predicated region
    $region14: #{tpu_custom_call.1} parent=1 // pred_check
      %p85 = pneg %p84
    $region15: #{tpu_custom_call.1} parent=1 // pred_check_branch
      %87 = sbr.rel (%p85) target = $region17
    $region16: #{tpu_custom_call.1} parent=1 // pred_region
      %v88 = vld [vmem:[%s59] sm:$0xff]
      %v89 = vld [vmem:[%s59 + $0x8] sm:$0xff]
      %v90 = vld [vmem:[%s59 + $0x10] sm:$0xff]
      %v91 = vld [vmem:[%s59 + $0x18] sm:$0xff]
      %v92 = vld [vmem:[%s71] sm:$0xff]
      %v93 = vld [vmem:[%s71 + $0x8] sm:$0xff]
      %v94 = vld [vmem:[%s71 + $0x10] sm:$0xff]
      %v95 = vld [vmem:[%s71 + $0x18] sm:$0xff]
      %v96 = vlaneseq
      %v97 = vand.u32 %v96, 127
      %v98 = vlaneseq
      %v99 = vshrl.u32 %v98, 7
      %v100 = vadd.s32 %v99, 8
      %v101 = vadd.s32 %v99, 16
      %v102 = vadd.s32 %v99, 24
      %103 = vset.pattern.permute.xlu0 0
      %104 = vperm.xlu0 %103, %v92
      %v105 = vpop.permute.xlu0 %104
      %106 = vset.pattern.permute.xlu0 0
      %107 = vperm.xlu0 %106, %v93
      %v108 = vpop.permute.xlu0 %107
      %109 = vset.pattern.permute.xlu0 0
      %110 = vperm.xlu0 %109, %v94
      %v111 = vpop.permute.xlu0 %110
      %112 = vset.pattern.permute.xlu0 0
      %113 = vperm.xlu0 %112, %v95
      %v114 = vpop.permute.xlu0 %113
      %vm115 = vcmp.eq.s32.totalorder %v97, %v105
      %vm116 = vcmp.eq.s32.totalorder %v97, %v108
      %vm117 = vcmp.eq.s32.totalorder %v97, %v111
      %vm118 = vcmp.eq.s32.totalorder %v97, %v114
      %v119 = vstv %s83
      %v120 = vadd.s32 %v99, %v119
      %v121 = vadd.s32 %v100, %v119
      %v122 = vadd.s32 %v101, %v119
      %v123 = vadd.s32 %v102, %v119
      %vm124 = vcmp.lt.s32.totalorder %v120, 32
      %vm125 = vcmp.lt.s32.totalorder %v121, 32
      %vm126 = vcmp.lt.s32.totalorder %v122, 32
      %vm127 = vcmp.lt.s32.totalorder %v123, 32
      %vm128 = vmand %vm115, %vm124
      %vm129 = vmand %vm116, %vm125
      %vm130 = vmand %vm117, %vm126
      %vm131 = vmand %vm118, %vm127
      %v132 = vsel %vm128, %v88, 0.0
      %v133 = vsel %vm129, %v89, 0.0
      %v134 = vsel %vm130, %v90, 0.0
      %v135 = vsel %vm131, %v91, 0.0
      %v136 = vld [vmem:[#allocation2] sm:$0x1]
      %vm137 = vcmask 326656
      %v138 = vsel %vm137, %v132, 0.0
      %v139 = vsel %vm137, %v133, 0.0
      %v140 = vadd.f32 %v138, %v139
      %v141 = vsel %vm137, %v134, 0.0
      %v142 = vadd.f32 %v140, %v141
      %v143 = vsel %vm137, %v135, 0.0
      %v144 = vadd.f32 %v142, %v143
      %145 = vadd.xlane.f32.xlu0 %v144
      %v146 = vpop.xlane.xlu0 %145
      %v147 = vrot.slane %v146, 4
      %v148 = vadd.f32 %v146, %v147
      %v149 = vrot.slane %v148, 2
      %v150 = vadd.f32 %v148, %v149
      %v151 = vrot.slane %v150, 1
      %v152 = vadd.f32 %v150, %v151
      %s153 = vtos %v152
      %v154 = vstv %s153
      %v155 = vadd.f32 %v136, %v154
      %vm156 = vcmask 0
      %157 = vst.msk [vmem:[#allocation2] sm:$0x1] %vm156, %v155
    $region17: #{tpu_custom_call.1} parent=1 // pred_fallthru
      _
    // Predicated region
    $region18: #{tpu_custom_call.1} parent=1 // pred_check
      _
    $region19: #{tpu_custom_call.1} parent=1 // pred_check_branch
      %159 = sbr.rel (0) target = $region21
    $region20: #{tpu_custom_call.1} parent=1 // pred_region
      %161 = vsyncadd [#allocation3], 0
      %s163 = sshll.u32 [#allocation2], 4
      %s164 = int_to_ptr.vmem [resolvable:$true] %s163
      %s165 = sshll.u32 %s2, 4
      %s166 = int_to_ptr.hbm [resolvable:$true] %s165
      %168 = dma.vmem_to_hbm [thread:$0]  %s164, 16, %s166, [#allocation3]
    $region21: #{tpu_custom_call.1} parent=1 // pred_fallthru
      _
    // Predicated region
    $region22: #{tpu_custom_call.1} parent=1 // pred_check
      _
    $region23: #{tpu_custom_call.1} parent=1 // pred_check_branch
      %170 = sbr.rel (0) target = $region25
    $region24: #{tpu_custom_call.1} parent=1 // pred_region
      %172 = dma.done [#allocation3], 16
    $region25: #{tpu_custom_call.1} parent=1 // pred_fallthru
      _
    %173 = vsyncpa [#allocation3], 1

</llo_original>
